<compile_context>
chip_gen: v6e
topology: v6e:2x2x1
jax: 0.10.0
libtpu: 0.0.40
codegen_flags: <defaults>
</compile_context>

<pallas_src>
import functools

import numpy as np
import jax
import jax.numpy as jnp
from jax import lax
from jax.experimental import pallas as pl
from jax.experimental.pallas import tpu as pltpu


def _completeness_kernel(pred_ref, lab_ref, pos_ref, neg_ref, *,
                         sample_split, keep_neg):
    """Fused class-wise hinge loss + OHEM for one tile of groups.

    pred_ref: (D, GS, TG) — classes leading, group members on sublanes,
              groups on lanes.
    lab_ref:  (GS, TG) int32, 1-based class ids.
    pos_ref / neg_ref: (1, 1) f32 accumulators (output-resident across grid).
    """
    i = pl.program_id(0)

    @pl.when(i == 0)
    def _init():
        pos_ref[...] = jnp.zeros_like(pos_ref)
        neg_ref[...] = jnp.zeros_like(neg_ref)

    pred = pred_ref[...].astype(jnp.float32)          # (D, GS, TG)
    lab = lab_ref[...]                                 # (GS, TG)
    D, GS, TG = pred.shape

    # pred[sample, label-1] via one-hot over the *leading* class axis:
    # the reduce over axis 0 is elementwise vreg adds (no cross-lane work).
    cls = lax.broadcasted_iota(jnp.int32, (D, GS, TG), 0)
    onehot = (cls == (lab - 1)[None, :, :]).astype(jnp.float32)
    picked = jnp.sum(pred * onehot, axis=0)            # (GS, TG)

    # ---- positive part: rows [0, sample_split); ratio 1.0 => keep all ----
    pos_losses = jnp.maximum(jnp.float32(0.0),
                             jnp.float32(1.0) - picked[:sample_split, :])
    pos_tile = jnp.sum(pos_losses, keepdims=True)      # (1, 1)

    # ---- negative part: rows [sample_split, GS); top-keep_neg per group ----
    neg_losses = jnp.maximum(jnp.float32(0.0),
                             jnp.float32(1.0) + picked[sample_split:, :])
    neg_gs = GS - sample_split

    if keep_neg >= neg_gs:
        # Keep everything: plain sum, no top-k loop.
        neg_tile = jnp.sum(neg_losses, keepdims=True)
    elif keep_neg == 1:
        # Most common case (small ohem_ratio): one sublane max per group.
        neg_tile = jnp.sum(jnp.max(neg_losses, axis=0, keepdims=True),
                           keepdims=True)
    else:
        # Iterative top-k extraction (losses >= 0, -1 sentinel never re-picked
        # while keep_neg <= neg_gs).  Per-group totals accumulate in a (1, TG)
        # vector; a single cross-lane reduce happens after the loop.
        row = lax.broadcasted_iota(jnp.int32, (neg_gs, TG), 0)
        work = neg_losses
        totals = jnp.zeros((1, TG), jnp.float32)
        for it in range(keep_neg):
            m = jnp.max(work, axis=0, keepdims=True)   # (1, TG)
            totals = totals + m
            if it + 1 < keep_neg:                      # no masking needed last iter
                is_max = work == m
                first = jnp.min(jnp.where(is_max, row, neg_gs),
                                axis=0, keepdims=True)
                work = jnp.where(row == first, jnp.float32(-1.0), work)
        neg_tile = jnp.sum(totals, keepdims=True)

    pos_ref[...] += pos_tile
    neg_ref[...] += neg_tile


def completeness_loss(pred, labels, sample_split, sample_group_size,
                      ohem_ratio=0.17):
    """Pallas/JAX equivalent of CompletenessLoss.forward (scalar)."""
    pred = jnp.asarray(pred)
    labels = jnp.asarray(labels)
    n, d = pred.shape
    assert n % sample_group_size == 0, "mismatch between sample size and group size"
    assert 0 < sample_split < sample_group_size
    g = n // sample_group_size
    neg_gs = sample_group_size - sample_split
    keep_neg = max(int(neg_gs * ohem_ratio), 1)

    # Lane-dense layout plumbing (single XLA transpose, no per-branch slices):
    # pred -> (D, GS, G); labels -> (GS, G).
    pred3 = jnp.transpose(pred.reshape(g, sample_group_size, d), (2, 1, 0))
    lab2 = jnp.transpose(labels.reshape(g, sample_group_size).astype(jnp.int32),
                         (1, 0))

    # Tile the group (lane) axis: a tile must be a multiple of 128 or the full
    # extent.  Kept modest so double-buffered blocks fit v7x's smaller VMEM.
    tg = g
    for cand in (512, 256, 128):
        if g % cand == 0:
            tg = cand
            break
    n_tiles = g // tg
    # TODO(synk): pad the group axis to a multiple of 128 (with in-kernel
    # masking) so huge non-divisible G still pipelines instead of one big tile.

    kernel = functools.partial(_completeness_kernel,
                               sample_split=int(sample_split),
                               keep_neg=int(keep_neg))

    bytes_accessed = int(pred3.size * pred3.dtype.itemsize + lab2.size * 4 + 8)
    cost = pl.CostEstimate(flops=8 * n * d, transcendentals=0,
                           bytes_accessed=bytes_accessed)

    pos_sum, neg_sum = pl.pallas_call(
        kernel,
        out_shape=(jax.ShapeDtypeStruct((1, 1), jnp.float32),
                   jax.ShapeDtypeStruct((1, 1), jnp.float32)),
        grid=(n_tiles,),
        in_specs=[
            pl.BlockSpec((d, sample_group_size, tg), lambda i: (0, 0, i)),
            pl.BlockSpec((sample_group_size, tg), lambda i: (0, i)),
        ],
        out_specs=(
            pl.BlockSpec((1, 1), lambda i: (0, 0)),
            pl.BlockSpec((1, 1), lambda i: (0, 0)),
        ),
        compiler_params=pltpu.CompilerParams(
            dimension_semantics=("arbitrary",),
            vmem_limit_bytes=32 * 1024 * 1024),
        cost_estimate=cost,
    )(pred3, lab2)

    pos_cnt = g * sample_split
    neg_cnt = max(int(g * neg_gs * ohem_ratio), 1)
    denom = jnp.float32(pos_cnt + neg_cnt)
    return (pos_sum[0, 0] + neg_sum[0, 0]) / denom


def _numpy_reference(pred, labels, sample_split, sample_group_size,
                     ohem_ratio=0.17):
    pred = np.asarray(pred, np.float64)
    labels = np.asarray(labels, np.int64)
    pred_dim = pred.shape[1]
    pred_g = pred.reshape(-1, sample_group_size, pred_dim)
    labels_g = labels.reshape(-1, sample_group_size)

    def ohem(p, l, is_pos, ratio, gsz):
        nn = p.shape[0]
        losses = np.maximum(0.0, 1.0 - is_pos * p[np.arange(nn), l - 1])
        losses = losses.reshape(-1, gsz)
        keep = max(int(gsz * ratio), 1)
        srt = np.sort(losses, axis=1)[:, ::-1]
        return srt[:, :keep].sum()

    pos_prob = pred_g[:, :sample_split, :].reshape(-1, pred_dim)
    neg_prob = pred_g[:, sample_split:, :].reshape(-1, pred_dim)
    pos_ls = ohem(pos_prob, labels_g[:, :sample_split].reshape(-1), 1, 1.0,
                  sample_split)
    neg_ls = ohem(neg_prob, labels_g[:, sample_split:].reshape(-1), -1,
                  ohem_ratio, sample_group_size - sample_split)
    pos_cnt = pos_prob.shape[0]
    neg_cnt = max(int(neg_prob.shape[0] * ohem_ratio), 1)
    return pos_ls / float(pos_cnt + neg_cnt) + neg_ls / float(pos_cnt + neg_cnt)


if __name__ == "__main__":
    # Small synthetic problem: 2 groups x 8 samples/group, 4 completeness classes.
    num_groups = 2
    sample_group_size = 8
    sample_split = 2
    pred_dim = 4
    n = num_groups * sample_group_size

    key = jax.random.PRNGKey(0)
    k_pred, k_lab = jax.random.split(key)
    pred = jax.random.normal(k_pred, (n, pred_dim), dtype=jnp.float32)
    labels = jax.random.randint(k_lab, (n,), 1, pred_dim + 1, dtype=jnp.int32)

    # Default ratio -> keep_neg == 1 (fast path).
    loss = completeness_loss(pred, labels, sample_split, sample_group_size,
                             ohem_ratio=0.17)
    loss = jax.block_until_ready(loss)
    ref = _numpy_reference(np.asarray(pred), np.asarray(labels),
                           sample_split, sample_group_size, ohem_ratio=0.17)
    np.testing.assert_allclose(float(loss), float(ref), rtol=1e-5, atol=1e-5)

    # Larger ratio -> keep_neg > 1 (exercises the general top-k loop).
    loss2 = completeness_loss(pred, labels, sample_split, sample_group_size,
                              ohem_ratio=0.5)
    loss2 = jax.block_until_ready(loss2)
    ref2 = _numpy_reference(np.asarray(pred), np.asarray(labels),
                            sample_split, sample_group_size, ohem_ratio=0.5)
    np.testing.assert_allclose(float(loss2), float(ref2), rtol=1e-5, atol=1e-5)

    print("KERNEL_OK")
</pallas_src>

<mosaic_0001>
module attributes {stable_mosaic.version = 11 : i64} {
  func.func @_completeness_kernel(%arg0: i32, %arg1: memref<4x8x2xf32, #tpu.memory_space<vmem>>, %arg2: memref<8x2xi32, #tpu.memory_space<vmem>>, %arg3: memref<1x1xf32, #tpu.memory_space<vmem>>, %arg4: memref<1x1xf32, #tpu.memory_space<vmem>>) attributes {dimension_semantics = [#tpu.dimension_semantics<arbitrary>], iteration_bounds = array<i64: 1>, scalar_prefetch = 0 : i64, scratch_operands = 0 : i64, tpu.core_type = #tpu.core_type<tc>, window_params = [{transform_indices = @transform_0, window_bounds = array<i64: 4, 8, 2>}, {transform_indices = @transform_1, window_bounds = array<i64: 8, 2>}, {pipeline_mode = #tpu.pipeline_mode<synchronous>, transform_indices = @transform_2, window_bounds = array<i64: 1, 1>}, {pipeline_mode = #tpu.pipeline_mode<synchronous>, transform_indices = @transform_3, window_bounds = array<i64: 1, 1>}]} {
    %c0_i32 = arith.constant 0 : i32
    %0 = arith.cmpi eq, %arg0, %c0_i32 : i32
    %1 = arith.extui %0 : i1 to i32
    %c0_i32_0 = arith.constant 0 : i32
    %2 = arith.cmpi ne, %1, %c0_i32_0 : i32
    scf.if %2 {
      %cst_20 = arith.constant 0.000000e+00 : f32
      %43 = vector.broadcast %cst_20 : f32 to vector<1x1xf32>
      %c0_21 = arith.constant 0 : index
      %c0_22 = arith.constant 0 : index
      %44 = vector.load %arg3[%c0_21, %c0_22] : memref<1x1xf32, #tpu.memory_space<vmem>>, vector<1x1xf32>
      tpu.vector_store %arg3[%c0_21, %c0_22], %43 {strides = array<i32>} : memref<1x1xf32, #tpu.memory_space<vmem>>, vector<1x1xf32>,
      %cst_23 = arith.constant 0.000000e+00 : f32
      %45 = vector.broadcast %cst_23 : f32 to vector<1x1xf32>
      %c0_24 = arith.constant 0 : index
      %c0_25 = arith.constant 0 : index
      %46 = vector.load %arg4[%c0_24, %c0_25] : memref<1x1xf32, #tpu.memory_space<vmem>>, vector<1x1xf32>
      tpu.vector_store %arg4[%c0_24, %c0_25], %45 {strides = array<i32>} : memref<1x1xf32, #tpu.memory_space<vmem>>, vector<1x1xf32>,
    } else {
    }
    %c0 = arith.constant 0 : index
    %c0_1 = arith.constant 0 : index
    %c0_2 = arith.constant 0 : index
    %3 = vector.load %arg1[%c0, %c0_1, %c0_2] : memref<4x8x2xf32, #tpu.memory_space<vmem>>, vector<4x8x2xf32>
    %c0_3 = arith.constant 0 : index
    %c0_4 = arith.constant 0 : index
    %4 = vector.load %arg2[%c0_3, %c0_4] : memref<8x2xi32, #tpu.memory_space<vmem>>, vector<8x2xi32>
    %5 = tpu.iota {dimensions = array<i32: 0>} : vector<4x8x2xi32>
    %c1_i32 = arith.constant 1 : i32
    %6 = vector.broadcast %c1_i32 : i32 to vector<8x2xi32>
    %7 = arith.subi %4, %6 : vector<8x2xi32>
    %8 = vector.shape_cast %7 : vector<8x2xi32> to vector<1x8x2xi32>
    %9 = vector.broadcast %8 : vector<1x8x2xi32> to vector<4x8x2xi32>
    %10 = arith.cmpi eq, %5, %9 : vector<4x8x2xi32>
    %11 = arith.extui %10 : vector<4x8x2xi1> to vector<4x8x2xi32>
    %12 = arith.sitofp %11 : vector<4x8x2xi32> to vector<4x8x2xf32>
    %13 = arith.mulf %3, %12 : vector<4x8x2xf32>
    %cst = arith.constant dense<0.000000e+00> : vector<8x2xf32>
    %14 = vector.multi_reduction <add>, %13, %cst [0] : vector<4x8x2xf32> to vector<8x2xf32>
    %15 = vector.extract_strided_slice %14 {offsets = [0, 0], sizes = [2, 2], strides = [1, 1]} : vector<8x2xf32> to vector<2x2xf32>
    %cst_5 = arith.constant 1.000000e+00 : f32
    %16 = vector.broadcast %cst_5 : f32 to vector<2x2xf32>
    %17 = arith.subf %16, %15 : vector<2x2xf32>
    %cst_6 = arith.constant 0.000000e+00 : f32
    %18 = vector.broadcast %cst_6 : f32 to vector<2x2xf32>
    %19 = arith.maximumf %18, %17 : vector<2x2xf32>
    %20 = vector.shape_cast %19 : vector<2x2xf32> to vector<1x2x2xf32>
    %cst_7 = arith.constant dense<0.000000e+00> : vector<1xf32>
    %21 = vector.multi_reduction <add>, %20, %cst_7 [1, 2] : vector<1x2x2xf32> to vector<1xf32>
    %22 = vector.shape_cast %21 : vector<1xf32> to vector<1x1x1xf32>
    %23 = vector.extract %22[0, 0, 0] : f32 from vector<1x1x1xf32>
    %24 = vector.broadcast %23 : f32 to vector<1x1xf32>
    %25 = vector.extract_strided_slice %14 {offsets = [2, 0], sizes = [6, 2], strides = [1, 1]} : vector<8x2xf32> to vector<6x2xf32>
    %cst_8 = arith.constant 1.000000e+00 : f32
    %26 = vector.broadcast %cst_8 : f32 to vector<6x2xf32>
    %27 = arith.addf %26, %25 : vector<6x2xf32>
    %cst_9 = arith.constant 0.000000e+00 : f32
    %28 = vector.broadcast %cst_9 : f32 to vector<6x2xf32>
    %29 = arith.maximumf %28, %27 : vector<6x2xf32>
    %cst_10 = arith.constant dense<0xFF800000> : vector<2xf32>
    %30 = vector.multi_reduction <maximumf>, %29, %cst_10 [0] : vector<6x2xf32> to vector<2xf32>
    %31 = vector.shape_cast %30 : vector<2xf32> to vector<1x2xf32>
    %32 = vector.shape_cast %31 : vector<1x2xf32> to vector<1x1x2xf32>
    %cst_11 = arith.constant dense<0.000000e+00> : vector<1xf32>
    %33 = vector.multi_reduction <add>, %32, %cst_11 [1, 2] : vector<1x1x2xf32> to vector<1xf32>
    %34 = vector.shape_cast %33 : vector<1xf32> to vector<1x1x1xf32>
    %35 = vector.extract %34[0, 0, 0] : f32 from vector<1x1x1xf32>
    %36 = vector.broadcast %35 : f32 to vector<1x1xf32>
    %c0_12 = arith.constant 0 : index
    %c0_13 = arith.constant 0 : index
    %37 = vector.load %arg3[%c0_12, %c0_13] : memref<1x1xf32, #tpu.memory_space<vmem>>, vector<1x1xf32>
    %38 = arith.addf %37, %24 : vector<1x1xf32>
    %c0_14 = arith.constant 0 : index
    %c0_15 = arith.constant 0 : index
    %39 = vector.load %arg3[%c0_14, %c0_15] : memref<1x1xf32, #tpu.memory_space<vmem>>, vector<1x1xf32>
    tpu.vector_store %arg3[%c0_14, %c0_15], %38 {strides = array<i32>} : memref<1x1xf32, #tpu.memory_space<vmem>>, vector<1x1xf32>,
    %c0_16 = arith.constant 0 : index
    %c0_17 = arith.constant 0 : index
    %40 = vector.load %arg4[%c0_16, %c0_17] : memref<1x1xf32, #tpu.memory_space<vmem>>, vector<1x1xf32>
    %41 = arith.addf %40, %36 : vector<1x1xf32>
    %c0_18 = arith.constant 0 : index
    %c0_19 = arith.constant 0 : index
    %42 = vector.load %arg4[%c0_18, %c0_19] : memref<1x1xf32, #tpu.memory_space<vmem>>, vector<1x1xf32>
    tpu.vector_store %arg4[%c0_18, %c0_19], %41 {strides = array<i32>} : memref<1x1xf32, #tpu.memory_space<vmem>>, vector<1x1xf32>,
    return
  }
  func.func @transform_0(%arg0: i32) -> (i32, i32, i32) {
    %c0_i32 = arith.constant 0 : i32
    %c0_i32_0 = arith.constant 0 : i32
    %c0_i32_1 = arith.constant 0 : i32
    return %c0_i32, %c0_i32_0, %arg0 : i32, i32, i32
  }
  func.func @transform_1(%arg0: i32) -> (i32, i32) {
    %c0_i32 = arith.constant 0 : i32
    %c0_i32_0 = arith.constant 0 : i32
    return %c0_i32, %arg0 : i32, i32
  }
  func.func @transform_2(%arg0: i32) -> (i32, i32) {
    %c0_i32 = arith.constant 0 : i32
    %c0_i32_0 = arith.constant 0 : i32
    %c0_i32_1 = arith.constant 0 : i32
    return %c0_i32, %c0_i32_0 : i32, i32
  }
  func.func @transform_3(%arg0: i32) -> (i32, i32) {
    %c0_i32 = arith.constant 0 : i32
    %c0_i32_0 = arith.constant 0 : i32
    %c0_i32_1 = arith.constant 0 : i32
    return %c0_i32, %c0_i32_0 : i32, i32
  }
}

</mosaic_0001>

<llo_original>
// kernel: tpu_custom_call.1
$region0: #{tpu_custom_call.1}
  #allocation0 [shape = 'u32[]', space=smem, size = 0x4, offset = 0x4, fixed_abs, tag = 'smem constant byte address 0x4 - core index']
  #allocation1 [shape = 'u32[144,128]{1,0:T(1,128)}', space=vmem, size = 0x12000, scoped, tag = 'internal scratch']
  %s0 = inlined_call_operand.vmem [shape: f32[4,8,2], index: 0, kind: input, shape index: {}]
  %s1 = inlined_call_operand.vmem [shape: s32[8,2], index: 1, kind: input, shape index: {}]
  %s2 = inlined_call_operand.hbm [shape: f32[1,1], index: 2, kind: output, shape index: {0}]
  %s3 = inlined_call_operand.hbm [shape: f32[1,1], index: 3, kind: output, shape index: {1}]
  %4 = xla_tuple %s2, %s3
  %s5 = sld [smem:[#allocation0]]
  $region30: #{tpu_custom_call.1} parent=0
    _
  %s7 = ssub.s32 1, %s5
  %s8 = scalar_select 0, %s7, %s5
  $region1: #{tpu_custom_call.1} parent=0
    #allocation2 [shape = 'u8[512]{0}', space=vmem, size = 0x400, scoped, tag = 'output window, operand 0, single buffered']
    #allocation3 [shape = 's32[1]{0}', space=sflag, size = 0x4, scoped, tag = 'scoped memory for tpu_custom_call.1']
    #allocation4 [shape = 'u8[512]{0}', space=vmem, size = 0x400, scoped, tag = 'output window, operand 1, single buffered']
    #allocation5 [shape = 's32[1]{0}', space=sflag, size = 0x4, scoped, tag = 'scoped memory for tpu_custom_call.1']
    %9 = vsyncpa [#allocation3], 0
    %10 = vsyncpa [#allocation5], 0
    // Predicated region
    $region2: #{tpu_custom_call.1} parent=1 // pred_check
      _
    $region3: #{tpu_custom_call.1} parent=1 // pred_check_branch
      %12 = sbr.rel (0) target = $region5
    $region4: #{tpu_custom_call.1} parent=1 // pred_region
      _
    $region5: #{tpu_custom_call.1} parent=1 // pred_fallthru
      _
    // Predicated region
    $region6: #{tpu_custom_call.1} parent=1 // pred_check
      _
    $region7: #{tpu_custom_call.1} parent=1 // pred_check_branch
      %14 = sbr.rel (0) target = $region9
    $region8: #{tpu_custom_call.1} parent=1 // pred_region
      _
    $region9: #{tpu_custom_call.1} parent=1 // pred_fallthru
      _
    %p15 = scmp.eq.s32.totalorder 0, 0
    // Predicated region
    $region10: #{tpu_custom_call.1} parent=1 // pred_check
      %p16 = pneg %p15
    $region11: #{tpu_custom_call.1} parent=1 // pred_check_branch
      %18 = sbr.rel (%p16) target = $region13
    $region12: #{tpu_custom_call.1} parent=1 // pred_region
      %vm19 = vcmask 0
      %20 = vst.msk [vmem:[#allocation2] sm:$0x1] %vm19, 0.0
      %21 = vst.msk [vmem:[#allocation4] sm:$0x1] %vm19, 0.0
    $region13: #{tpu_custom_call.1} parent=1 // pred_fallthru
      _
    %v22 = vld [vmem:[%s0] sm:$0xff]
    %v23 = vld [vmem:[%s0 + $0x8] sm:$0xff]
    %v24 = vld [vmem:[%s0 + $0x10] sm:$0xff]
    %v25 = vld [vmem:[%s0 + $0x18] sm:$0xff]
    %v26 = vld [vmem:[%s1] sm:$0xff]
    %v27 = vsub.s32 %v26, 1
    %vm28 = vcmp.eq.s32.totalorder %v27, 0
    %vm29 = vcmp.eq.s32.totalorder %v27, 1
    %vm30 = vcmp.eq.s32.totalorder %v27, 2
    %vm31 = vcmp.eq.s32.totalorder %v27, 3
    %v32 = vsel %vm28, 1, 0
    %v33 = vsel %vm29, 1, 0
    %v34 = vsel %vm30, 1, 0
    %v35 = vsel %vm31, 1, 0
    %v36 = vcvt.s32.f32 %v32
    %v37 = vcvt.s32.f32 %v33
    %v38 = vcvt.s32.f32 %v34
    %v39 = vcvt.s32.f32 %v35
    %v40 = vmul.f32 %v22, %v36
    %v41 = vmul.f32 %v23, %v37
    %v42 = vmul.f32 %v24, %v38
    %v43 = vmul.f32 %v25, %v39
    %vm44 = vcmask 15360
    %v45 = vsel %vm44, %v40, 0.0
    %v46 = vsel %vm44, %v41, 0.0
    %v47 = vadd.f32 %v45, %v46
    %v48 = vsel %vm44, %v42, 0.0
    %v49 = vadd.f32 %v47, %v48
    %v50 = vsel %vm44, %v43, 0.0
    %v51 = vadd.f32 %v49, %v50
    %v52 = vsub.f32 1.0, %v51
    %v53 = vmax.f32 %v52, 0.0
    %vm54 = vcmask 9216
    %v55 = vsel %vm54, %v53, 0.0
    %56 = vadd.xlane.f32.xlu0 %v55
    %v57 = vpop.xlane.xlu0 %56
    %v58 = vrot.slane %v57, 4
    %v59 = vadd.f32 %v57, %v58
    %v60 = vrot.slane %v59, 2
    %v61 = vadd.f32 %v59, %v60
    %v62 = vrot.slane %v61, 1
    %v63 = vadd.f32 %v61, %v62
    %s64 = vtos %v63
    %v65 = vstv %s64
    %v66 = vadd.f32 %v51, 1.0
    %v67 = vmax.f32 %v66, 0.0
    %vm68 = vcmask 15362
    %v69 = vsel %vm68, %v67, -inf
    %v70 = vrot.slane %v69, 4
    %v71 = vmax.f32 %v69, %v70
    %v72 = vrot.slane %v71, 2
    %v73 = vmax.f32 %v71, %v72
    %v74 = vrot.slane %v73, 1
    %v75 = vmax.f32 %v73, %v74
    %vm76 = vcmask 8192
    %v77 = vsel %vm76, %v75, 0.0
    %78 = vadd.xlane.f32.xlu0 %v77
    %v79 = vpop.xlane.xlu0 %78
    %v80 = vrot.slane %v79, 4
    %v81 = vadd.f32 %v79, %v80
    %v82 = vrot.slane %v81, 2
    %v83 = vadd.f32 %v81, %v82
    %v84 = vrot.slane %v83, 1
    %v85 = vadd.f32 %v83, %v84
    %s86 = vtos %v85
    %v87 = vstv %s86
    %v88 = vld [vmem:[#allocation2] sm:$0x1]
    %v89 = vadd.f32 %v88, %v65
    %vm90 = vcmask 0
    %91 = vst.msk [vmem:[#allocation2] sm:$0x1] %vm90, %v89
    %v92 = vld [vmem:[#allocation4] sm:$0x1]
    %v93 = vadd.f32 %v92, %v87
    %94 = vst.msk [vmem:[#allocation4] sm:$0x1] %vm90, %v93
    // Predicated region
    $region14: #{tpu_custom_call.1} parent=1 // pred_check
      _
    $region15: #{tpu_custom_call.1} parent=1 // pred_check_branch
      %96 = sbr.rel (0) target = $region17
    $region16: #{tpu_custom_call.1} parent=1 // pred_region
      %s98 = ssub.s32 16, 16
      %99 = vsyncadd [#allocation3], %s98
      %s101 = sshll.u32 [#allocation2], 4
      %s102 = int_to_ptr.vmem [resolvable:$true] %s101
      %104 = dma.vmem_to_hbm [thread:$0]  %s102, 16, %s2, [#allocation3]
    $region17: #{tpu_custom_call.1} parent=1 // pred_fallthru
      _
    // Predicated region
    $region18: #{tpu_custom_call.1} parent=1 // pred_check
      _
    $region19: #{tpu_custom_call.1} parent=1 // pred_check_branch
      %106 = sbr.rel (0) target = $region21
    $region20: #{tpu_custom_call.1} parent=1 // pred_region
      %s108 = ssub.s32 16, 16
      %109 = vsyncadd [#allocation5], %s108
      %s111 = sshll.u32 [#allocation4], 4
      %s112 = int_to_ptr.vmem [resolvable:$true] %s111
      %114 = dma.vmem_to_hbm [thread:$0]  %s112, 16, %s3, [#allocation5]
    $region21: #{tpu_custom_call.1} parent=1 // pred_fallthru
      _
    // Predicated region
    $region22: #{tpu_custom_call.1} parent=1 // pred_check
      _
    $region23: #{tpu_custom_call.1} parent=1 // pred_check_branch
      %116 = sbr.rel (0) target = $region25
    $region24: #{tpu_custom_call.1} parent=1 // pred_region
      %117 = dma.done [#allocation3], 16
    $region25: #{tpu_custom_call.1} parent=1 // pred_fallthru
      _
    // Predicated region
    $region26: #{tpu_custom_call.1} parent=1 // pred_check
      _
    $region27: #{tpu_custom_call.1} parent=1 // pred_check_branch
      %119 = sbr.rel (0) target = $region29
    $region28: #{tpu_custom_call.1} parent=1 // pred_region
      %120 = dma.done [#allocation5], 16
    $region29: #{tpu_custom_call.1} parent=1 // pred_fallthru
      _
    %121 = vsyncpa [#allocation3], 1
    %122 = vsyncpa [#allocation5], 1

</llo_original>
